<compile_context>
chip_gen: v6e
topology: v6e:2x2x1
jax: 0.10.0
libtpu: 0.0.40
codegen_flags: <defaults>
</compile_context>

<pallas_src>
import functools
import math

import jax
import jax.numpy as jnp
from jax.experimental import pallas as pl
from jax.experimental.pallas import tpu as pltpu


def _embeddings_kernel(x_ref, w_ref, b_ref, o_ref):
    """One row-tile:  o = x @ W + b  (W/b already folded & lane-packed)."""
    y = jnp.dot(x_ref[...], w_ref[...], preferred_element_type=jnp.float32)
    o_ref[...] = (y + b_ref[...]).astype(o_ref.dtype)


def _round_up(a, b):
    return ((a + b - 1) // b) * b


def _cdiv(a, b):
    return (a + b - 1) // b


def _pack_factor(f, h, itemsize):
    """Smallest P making both packed input (P*f) and packed output (P*h)
    lane-dense (multiples of 128); falls back to output-only / no packing if
    the expanded block-diagonal weight kron(I_P, W) would get large."""
    p_out = 128 // math.gcd(h, 128)
    p_in = 128 // math.gcd(f, 128)
    p_both = (p_out * p_in) // math.gcd(p_out, p_in)
    for p in (p_both, p_out, 1):
        if (p * f) * (p * h) * itemsize <= (4 << 20):
            return p
    return 1


@functools.partial(jax.jit, static_argnames=("row_tile",))
def embeddings_forward(x, w_sc, b_sc, w_pos, b_pos, *, row_tile=32768):
    """x: [N, F]; w_*: [F, H]; b_*: [1, H] or [H]  ->  [N, H]."""
    N, F = x.shape
    H = w_sc.shape[1]
    dtype = x.dtype
    itemsize = jnp.dtype(dtype).itemsize
    sublane = max(8, 32 // itemsize)          # 8 rows f32 / 16 bf16 / 32 int8

    # --- Fold the two linear layers (same input x): one matmul instead of two.
    w = (w_sc + w_pos).astype(dtype)                     # [F, H]
    b = (b_sc + b_pos).reshape(1, H).astype(dtype)       # [1, H]

    # --- Lane-density packing factor and row-tile granularity (original rows).
    P = _pack_factor(F, H, itemsize)
    unit = sublane * P                                   # 128 rows for f32/P=16

    # --- Pad rows only to the packing unit; ragged last grid block handles the
    #     remainder vs. the row tile (no rt-sized padding / garbage writes).
    n_pad = _round_up(N, unit)
    if n_pad != N:
        # NOTE: for unaligned N this is one extra pass over x (tiny vs. output
        # traffic); could be fused into the pallas_call via allow_input_fusion.
        x = jnp.pad(x, ((0, n_pad - N), (0, 0)))

    # --- Row tile (counted in original x rows).
    rt = _round_up(max(int(row_tile), unit), unit)
    # Keep the double-buffered working set under the smallest default scoped
    # VMEM limit (16 MiB on v5e) so no compiler flags are needed anywhere.
    bytes_per_row = (F + H) * itemsize
    vmem_budget = 12 << 20
    rt = min(rt, max(unit, (vmem_budget // (2 * bytes_per_row)) // unit * unit))
    # Keep >= 2 grid steps so the "parallel" axis can shard across v7x's 2 TCs.
    rt = min(rt, _round_up(_cdiv(n_pad, 2), unit))
    rt = min(max(rt, unit), n_pad)

    # --- Wrapper-side packing (row-major reshapes / one-time weight expansion).
    xp = x.reshape(n_pad // P, P * F)                    # [rows_p, P*F]
    wp = jnp.kron(jnp.eye(P, dtype=w.dtype), w)          # block-diag [P*F, P*H]
    bp = jnp.tile(b, (1, P))                             # [1, P*H]

    rows_p = n_pad // P
    rt_p = rt // P
    grid = (_cdiv(rows_p, rt_p),)

    cost = pl.CostEstimate(
        flops=2 * rows_p * (P * F) * (P * H),
        transcendentals=0,
        bytes_accessed=n_pad * (F + H) * itemsize
        + (P * F) * (P * H) * itemsize
        + (P * H) * itemsize,
    )

    out_p = pl.pallas_call(
        _embeddings_kernel,
        out_shape=jax.ShapeDtypeStruct((rows_p, P * H), dtype),
        grid_spec=pltpu.PrefetchScalarGridSpec(
            num_scalar_prefetch=0,
            grid=grid,
            in_specs=[
                pl.BlockSpec((rt_p, P * F), lambda i: (i, 0)),   # packed x tile
                pl.BlockSpec((P * F, P * H), lambda i: (0, 0)),  # folded W (resident)
                pl.BlockSpec((1, P * H), lambda i: (0, 0)),      # folded b (resident)
            ],
            out_specs=pl.BlockSpec((rt_p, P * H), lambda i: (i, 0)),
        ),
        compiler_params=pltpu.CompilerParams(
            dimension_semantics=("parallel",),
        ),
        cost_estimate=cost,
    )(xp, wp, bp)

    out = out_p.reshape(n_pad, H)
    if n_pad != N:
        out = out[:N]
    return out


def init_linear_params(key, in_features, out_features, dtype=jnp.float32):
    """Deterministic nn.Linear-style init: U(-1/sqrt(in), 1/sqrt(in)).

    Returned weight is already transposed to [in_features, out_features].
    """
    k_w, k_b = jax.random.split(key)
    bound = 1.0 / jnp.sqrt(jnp.asarray(in_features, dtype))
    w = jax.random.uniform(
        k_w, (in_features, out_features), dtype, minval=-bound, maxval=bound
    )
    b = jax.random.uniform(
        k_b, (1, out_features), dtype, minval=-bound, maxval=bound
    )
    return w, b


def _reference(x, w_sc, b_sc, w_pos, b_pos):
    return (x @ w_sc + b_sc) + (x @ w_pos + b_pos)


if __name__ == "__main__":
    # Small shapes consistent with the module: graph node features -> hidden dim.
    SC_FEATURES = 8   # args.sc_features
    HIDDEN_DIM = 32   # args.hidden_dim

    key = jax.random.PRNGKey(0)
    k_x, k_sc, k_pos, k_x2 = jax.random.split(key, 4)

    w_sc, b_sc = init_linear_params(k_sc, SC_FEATURES, HIDDEN_DIM)
    w_pos, b_pos = init_linear_params(k_pos, SC_FEATURES, HIDDEN_DIM)

    # Case 1: tiny graph (N=16) — pads to the minimum packed unit, single step.
    N1 = 16
    x1 = jax.random.normal(k_x, (N1, SC_FEATURES), jnp.float32)
    out1 = jax.block_until_ready(embeddings_forward(x1, w_sc, b_sc, w_pos, b_pos))
    ref1 = _reference(x1, w_sc, b_sc, w_pos, b_pos)
    assert out1.shape == (N1, HIDDEN_DIM)
    assert jnp.allclose(out1, ref1, atol=1e-5, rtol=1e-5)

    # Case 2: non-divisible N with a small row tile — multi-step grid plus a
    #         ragged last block (rows_p=19 vs rt_p=16).
    N2 = 300
    x2 = jax.random.normal(k_x2, (N2, SC_FEATURES), jnp.float32)
    out2 = jax.block_until_ready(
        embeddings_forward(x2, w_sc, b_sc, w_pos, b_pos, row_tile=256)
    )
    ref2 = _reference(x2, w_sc, b_sc, w_pos, b_pos)
    assert out2.shape == (N2, HIDDEN_DIM)
    assert jnp.allclose(out2, ref2, atol=1e-5, rtol=1e-5)

    # Case 3: default (large) row-tile path with the >=2-grid-step clamp.
    N3 = 1000
    x3 = jax.random.normal(jax.random.PRNGKey(7), (N3, SC_FEATURES), jnp.float32)
    out3 = jax.block_until_ready(embeddings_forward(x3, w_sc, b_sc, w_pos, b_pos))
    ref3 = _reference(x3, w_sc, b_sc, w_pos, b_pos)
    assert out3.shape == (N3, HIDDEN_DIM)
    assert jnp.allclose(out3, ref3, atol=1e-5, rtol=1e-5)

    print("KERNEL_OK")
</pallas_src>

<mosaic_0001>
module attributes {stable_mosaic.version = 11 : i64} {
  func.func @_embeddings_kernel(%arg0: i32, %arg1: memref<8x128xf32, #tpu.memory_space<vmem>>, %arg2: memref<128x512xf32, #tpu.memory_space<vmem>>, %arg3: memref<1x512xf32, #tpu.memory_space<vmem>>, %arg4: memref<8x512xf32, #tpu.memory_space<vmem>>) attributes {dimension_semantics = [#tpu.dimension_semantics<parallel>], iteration_bounds = array<i64: 1>, scalar_prefetch = 0 : i64, scratch_operands = 0 : i64, tpu.core_type = #tpu.core_type<tc>, window_params = [{transform_indices = @transform_0, window_bounds = array<i64: 8, 128>}, {pipeline_mode = #tpu.pipeline_mode<synchronous>, transform_indices = @transform_1, window_bounds = array<i64: 128, 512>}, {pipeline_mode = #tpu.pipeline_mode<synchronous>, transform_indices = @transform_2, window_bounds = array<i64: 1, 512>}, {transform_indices = @transform_3, window_bounds = array<i64: 8, 512>}]} {
    %c0 = arith.constant 0 : index
    %c0_0 = arith.constant 0 : index
    %0 = vector.load %arg1[%c0, %c0_0] : memref<8x128xf32, #tpu.memory_space<vmem>>, vector<8x128xf32>
    %c0_1 = arith.constant 0 : index
    %c0_2 = arith.constant 0 : index
    %1 = vector.load %arg2[%c0_1, %c0_2] : memref<128x512xf32, #tpu.memory_space<vmem>>, vector<128x512xf32>
    %cst = arith.constant dense<0.000000e+00> : vector<8x512xf32>
    %2 = tpu.matmul %0, %1, %cst {dimension_numbers = #tpu.dot_dimension_numbers<[1], [0], [0], [1], [0, 0, 1, 1], [], []>} : vector<8x128xf32>, vector<128x512xf32>, vector<8x512xf32> -> vector<8x512xf32>
    %c0_3 = arith.constant 0 : index
    %c0_4 = arith.constant 0 : index
    %3 = vector.load %arg3[%c0_3, %c0_4] : memref<1x512xf32, #tpu.memory_space<vmem>>, vector<1x512xf32>
    %4 = vector.broadcast %3 : vector<1x512xf32> to vector<8x512xf32>
    %5 = arith.addf %2, %4 : vector<8x512xf32>
    %c0_5 = arith.constant 0 : index
    %c0_6 = arith.constant 0 : index
    %6 = vector.load %arg4[%c0_5, %c0_6] : memref<8x512xf32, #tpu.memory_space<vmem>>, vector<8x512xf32>
    tpu.vector_store %arg4[%c0_5, %c0_6], %5 {strides = array<i32>} : memref<8x512xf32, #tpu.memory_space<vmem>>, vector<8x512xf32>,
    return
  }
  func.func @transform_0(%arg0: i32) -> (i32, i32) {
    %c0_i32 = arith.constant 0 : i32
    %c0_i32_0 = arith.constant 0 : i32
    return %arg0, %c0_i32 : i32, i32
  }
  func.func @transform_1(%arg0: i32) -> (i32, i32) {
    %c0_i32 = arith.constant 0 : i32
    %c0_i32_0 = arith.constant 0 : i32
    %c0_i32_1 = arith.constant 0 : i32
    return %c0_i32, %c0_i32_0 : i32, i32
  }
  func.func @transform_2(%arg0: i32) -> (i32, i32) {
    %c0_i32 = arith.constant 0 : i32
    %c0_i32_0 = arith.constant 0 : i32
    %c0_i32_1 = arith.constant 0 : i32
    return %c0_i32, %c0_i32_0 : i32, i32
  }
  func.func @transform_3(%arg0: i32) -> (i32, i32) {
    %c0_i32 = arith.constant 0 : i32
    %c0_i32_0 = arith.constant 0 : i32
    return %arg0, %c0_i32 : i32, i32
  }
}

</mosaic_0001>

<llo_original>
// kernel: embeddings_forward.1
$region0: #{embeddings_forward.1}
  #allocation0 [shape = 'u32[]', space=smem, size = 0x4, offset = 0x4, fixed_abs, tag = 'smem constant byte address 0x4 - core index']
  #allocation1 [shape = 'u32[144,128]{1,0:T(1,128)}', space=vmem, size = 0x12000, scoped, tag = 'internal scratch']
  %s0 = inlined_call_operand.vmem [shape: f32[8,128], index: 0, kind: input, shape index: {}]
  %s1 = inlined_call_operand.vmem [shape: f32[128,512], index: 1, kind: input, shape index: {}]
  %s2 = inlined_call_operand.vmem [shape: f32[1,512], index: 2, kind: input, shape index: {}]
  %s3 = inlined_call_operand.vmem [shape: f32[8,512], index: 3, kind: output, shape index: {}]
  %s4 = sld [smem:[#allocation0]]
  $region22: #{embeddings_forward.1} parent=0
    _
  %s6 = ssub.s32 1, %s4
  %s7 = scalar_select 0, %s6, %s4
  // Predicated region
  $region2: #{embeddings_forward.1} parent=0 // pred_check
    _
  $region3: #{embeddings_forward.1} parent=0 // pred_check_branch
    %9 = sbr.rel (0) target = $region5
  $region4: #{embeddings_forward.1} parent=0 // pred_region
    _
  $region5: #{embeddings_forward.1} parent=0 // pred_fallthru
    _
  // Predicated region
  $region6: #{embeddings_forward.1} parent=0 // pred_check
    _
  $region7: #{embeddings_forward.1} parent=0 // pred_check_branch
    %11 = sbr.rel (0) target = $region9
  $region8: #{embeddings_forward.1} parent=0 // pred_region
    _
  $region9: #{embeddings_forward.1} parent=0 // pred_fallthru
    _
  // Predicated region
  $region10: #{embeddings_forward.1} parent=0 // pred_check
    _
  $region11: #{embeddings_forward.1} parent=0 // pred_check_branch
    %13 = sbr.rel (0) target = $region13
  $region12: #{embeddings_forward.1} parent=0 // pred_region
    _
  $region13: #{embeddings_forward.1} parent=0 // pred_fallthru
    _
  %v14 = vld [vmem:[%s0] sm:$0xff]
  %v15 = vld [vmem:[%s1] sm:$0xff]
  %v16 = vld [vmem:[%s1 + $0x8] sm:$0xff]
  %v17 = vld [vmem:[%s1 + $0x10] sm:$0xff]
  %v18 = vld [vmem:[%s1 + $0x18] sm:$0xff]
  %v19 = vld [vmem:[%s1 + $0x20] sm:$0xff]
  %v20 = vld [vmem:[%s1 + $0x28] sm:$0xff]
  %v21 = vld [vmem:[%s1 + $0x30] sm:$0xff]
  %v22 = vld [vmem:[%s1 + $0x38] sm:$0xff]
  %v23 = vld [vmem:[%s1 + $0x40] sm:$0xff]
  %v24 = vld [vmem:[%s1 + $0x48] sm:$0xff]
  %v25 = vld [vmem:[%s1 + $0x50] sm:$0xff]
  %v26 = vld [vmem:[%s1 + $0x58] sm:$0xff]
  %v27 = vld [vmem:[%s1 + $0x60] sm:$0xff]
  %v28 = vld [vmem:[%s1 + $0x68] sm:$0xff]
  %v29 = vld [vmem:[%s1 + $0x70] sm:$0xff]
  %v30 = vld [vmem:[%s1 + $0x78] sm:$0xff]
  %v31 = vld [vmem:[%s1 + $0x80] sm:$0xff]
  %v32 = vld [vmem:[%s1 + $0x88] sm:$0xff]
  %v33 = vld [vmem:[%s1 + $0x90] sm:$0xff]
  %v34 = vld [vmem:[%s1 + $0x98] sm:$0xff]
  %v35 = vld [vmem:[%s1 + $0xa0] sm:$0xff]
  %v36 = vld [vmem:[%s1 + $0xa8] sm:$0xff]
  %v37 = vld [vmem:[%s1 + $0xb0] sm:$0xff]
  %v38 = vld [vmem:[%s1 + $0xb8] sm:$0xff]
  %v39 = vld [vmem:[%s1 + $0xc0] sm:$0xff]
  %v40 = vld [vmem:[%s1 + $0xc8] sm:$0xff]
  %v41 = vld [vmem:[%s1 + $0xd0] sm:$0xff]
  %v42 = vld [vmem:[%s1 + $0xd8] sm:$0xff]
  %v43 = vld [vmem:[%s1 + $0xe0] sm:$0xff]
  %v44 = vld [vmem:[%s1 + $0xe8] sm:$0xff]
  %v45 = vld [vmem:[%s1 + $0xf0] sm:$0xff]
  %v46 = vld [vmem:[%s1 + $0xf8] sm:$0xff]
  %v47 = vld [vmem:[%s1 + $0x100] sm:$0xff]
  %v48 = vld [vmem:[%s1 + $0x108] sm:$0xff]
  %v49 = vld [vmem:[%s1 + $0x110] sm:$0xff]
  %v50 = vld [vmem:[%s1 + $0x118] sm:$0xff]
  %v51 = vld [vmem:[%s1 + $0x120] sm:$0xff]
  %v52 = vld [vmem:[%s1 + $0x128] sm:$0xff]
  %v53 = vld [vmem:[%s1 + $0x130] sm:$0xff]
  %v54 = vld [vmem:[%s1 + $0x138] sm:$0xff]
  %v55 = vld [vmem:[%s1 + $0x140] sm:$0xff]
  %v56 = vld [vmem:[%s1 + $0x148] sm:$0xff]
  %v57 = vld [vmem:[%s1 + $0x150] sm:$0xff]
  %v58 = vld [vmem:[%s1 + $0x158] sm:$0xff]
  %v59 = vld [vmem:[%s1 + $0x160] sm:$0xff]
  %v60 = vld [vmem:[%s1 + $0x168] sm:$0xff]
  %v61 = vld [vmem:[%s1 + $0x170] sm:$0xff]
  %v62 = vld [vmem:[%s1 + $0x178] sm:$0xff]
  %v63 = vld [vmem:[%s1 + $0x180] sm:$0xff]
  %v64 = vld [vmem:[%s1 + $0x188] sm:$0xff]
  %v65 = vld [vmem:[%s1 + $0x190] sm:$0xff]
  %v66 = vld [vmem:[%s1 + $0x198] sm:$0xff]
  %v67 = vld [vmem:[%s1 + $0x1a0] sm:$0xff]
  %v68 = vld [vmem:[%s1 + $0x1a8] sm:$0xff]
  %v69 = vld [vmem:[%s1 + $0x1b0] sm:$0xff]
  %v70 = vld [vmem:[%s1 + $0x1b8] sm:$0xff]
  %v71 = vld [vmem:[%s1 + $0x1c0] sm:$0xff]
  %v72 = vld [vmem:[%s1 + $0x1c8] sm:$0xff]
  %v73 = vld [vmem:[%s1 + $0x1d0] sm:$0xff]
  %v74 = vld [vmem:[%s1 + $0x1d8] sm:$0xff]
  %v75 = vld [vmem:[%s1 + $0x1e0] sm:$0xff]
  %v76 = vld [vmem:[%s1 + $0x1e8] sm:$0xff]
  %v77 = vld [vmem:[%s1 + $0x1f0] sm:$0xff]
  %v78 = vld [vmem:[%s1 + $0x1f8] sm:$0xff]
  %v79 = vld [vmem:[%s2] sm:$0xf]
  %v81 = vlaneseq
  %v82 = vshrl.u32 %v81, 7
  %v83 = vsub.s32 0, %v82
  %v84 = vrot.slane %v79, %v83
  %v85 = vlaneseq
  %v86 = vshrl.u32 %v85, 7
  %v87 = vsub.s32 1, %v86
  %v88 = vrot.slane %v79, %v87
  %v89 = vlaneseq
  %v90 = vshrl.u32 %v89, 7
  %v91 = vsub.s32 2, %v90
  %v92 = vrot.slane %v79, %v91
  %v93 = vlaneseq
  %v94 = vshrl.u32 %v93, 7
  %v95 = vsub.s32 3, %v94
  %v96 = vrot.slane %v79, %v95
  %101 = vmatprep.subr.mxu0 %v76
  %102 = vmatpush1.msra.mxu0 %v75
  %103 = vmatprep.subr.mxu0 %v72
  %104 = vmatpush1.msra.mxu0 %v71
  %105 = vmatprep.subr.mxu0 %v68
  %106 = vmatpush1.msra.mxu0 %v67
  %107 = vmatprep.subr.mxu0 %v64
  %108 = vmatpush1.msra.mxu0 %v63
  %109 = vmatprep.subr.mxu0 %v60
  %110 = vmatpush1.msra.mxu0 %v59
  %111 = vmatprep.subr.mxu0 %v56
  %112 = vmatpush1.msra.mxu0 %v55
  %113 = vmatprep.subr.mxu0 %v52
  %114 = vmatpush1.msra.mxu0 %v51
  %115 = vmatprep.subr.mxu0 %v48
  %116 = vmatpush1.msra.mxu0 %v47
  %117 = vmatprep.subr.mxu0 %v44
  %118 = vmatpush1.msra.mxu0 %v43
  %119 = vmatprep.subr.mxu0 %v40
  %120 = vmatpush1.msra.mxu0 %v39
  %121 = vmatprep.subr.mxu0 %v36
  %122 = vmatpush1.msra.mxu0 %v35
  %123 = vmatprep.subr.mxu0 %v32
  %124 = vmatpush1.msra.mxu0 %v31
  %125 = vmatprep.subr.mxu0 %v28
  %126 = vmatpush1.msra.mxu0 %v27
  %127 = vmatprep.subr.mxu0 %v24
  %128 = vmatpush1.msra.mxu0 %v23
  %129 = vmatprep.subr.mxu0 %v20
  %130 = vmatpush1.msra.mxu0 %v19
  %131 = vmatprep.subr.mxu0 %v16
  %132 = vmatpush1.msra.mxu0 %v15
  %133 = vmatprep.subr.mxu0 0.0
  %134 = vmatpush2.msra.mxu0 0.0
  %135 = vmatprep.subr.mxu0 0.0
  %136 = vmatpush2.msra.mxu0 0.0
  %137 = vmatprep.subr.mxu0 0.0
  %138 = vmatpush2.msra.mxu0 0.0
  %139 = vmatprep.subr.mxu0 0.0
  %140 = vmatpush2.msra.mxu0 0.0
  %141 = vmatprep.subr.mxu0 0.0
  %142 = vmatpush2.msra.mxu0 0.0
  %143 = vmatprep.subr.mxu0 0.0
  %144 = vmatpush2.msra.mxu0 0.0
  %145 = vmatprep.subr.mxu0 0.0
  %146 = vmatpush2.msra.mxu0 0.0
  %147 = vmatprep.subr.mxu0 0.0
  %148 = vmatpush2.msra.mxu0 0.0
  %149 = vmatprep.subr.mxu0 0.0
  %150 = vmatpush2.msra.mxu0 0.0
  %151 = vmatprep.subr.mxu0 0.0
  %152 = vmatpush2.msra.mxu0 0.0
  %153 = vmatprep.subr.mxu0 0.0
  %154 = vmatpush2.msra.mxu0 0.0
  %155 = vmatprep.subr.mxu0 0.0
  %156 = vmatpush2.msra.mxu0 0.0
  %157 = vmatprep.subr.mxu0 0.0
  %158 = vmatpush2.msra.mxu0 0.0
  %159 = vmatprep.subr.mxu0 0.0
  %160 = vmatpush2.msra.mxu0 0.0
  %161 = vmatprep.subr.mxu0 0.0
  %162 = vmatpush2.msra.mxu0 0.0
  %163 = vmatprep.subr.mxu0 0.0
  %164 = vmatpush2.msra.mxu0 0.0
  %165 = vmatprep.mubr.f32.mxu0 0.0
  %166 = vmatmul.mubr.f32.gmra.mxu0 %v14
  %v167 = vpop.f32.mrf.mxu0
  %v168 = vadd.f32 %v84, %v167
  %v169 = vpop.f32.mrf.mxu0
  %v170 = vadd.f32 %v88, %v169
  %171 = vdwg.mxu0
  %172 = vmatprep.subr.mxu0 %v78
  %173 = vmatpush1.msra.mxu0 %v77
  %174 = vmatprep.subr.mxu0 %v74
  %175 = vmatpush1.msra.mxu0 %v73
  %176 = vmatprep.subr.mxu0 %v70
  %177 = vmatpush1.msra.mxu0 %v69
  %178 = vmatprep.subr.mxu0 %v66
  %179 = vmatpush1.msra.mxu0 %v65
  %180 = vmatprep.subr.mxu0 %v62
  %181 = vmatpush1.msra.mxu0 %v61
  %182 = vmatprep.subr.mxu0 %v58
  %183 = vmatpush1.msra.mxu0 %v57
  %184 = vmatprep.subr.mxu0 %v54
  %185 = vmatpush1.msra.mxu0 %v53
  %186 = vmatprep.subr.mxu0 %v50
  %187 = vmatpush1.msra.mxu0 %v49
  %188 = vmatprep.subr.mxu0 %v46
  %189 = vmatpush1.msra.mxu0 %v45
  %190 = vmatprep.subr.mxu0 %v42
  %191 = vmatpush1.msra.mxu0 %v41
  %192 = vmatprep.subr.mxu0 %v38
  %193 = vmatpush1.msra.mxu0 %v37
  %194 = vmatprep.subr.mxu0 %v34
  %195 = vmatpush1.msra.mxu0 %v33
  %196 = vmatprep.subr.mxu0 %v30
  %197 = vmatpush1.msra.mxu0 %v29
  %198 = vmatprep.subr.mxu0 %v26
  %199 = vmatpush1.msra.mxu0 %v25
  %200 = vmatprep.subr.mxu0 %v22
  %201 = vmatpush1.msra.mxu0 %v21
  %202 = vmatprep.subr.mxu0 %v18
  %203 = vmatpush1.msra.mxu0 %v17
  %204 = vmatprep.subr.mxu0 0.0
  %205 = vmatpush2.msra.mxu0 0.0
  %206 = vmatprep.subr.mxu0 0.0
  %207 = vmatpush2.msra.mxu0 0.0
  %208 = vmatprep.subr.mxu0 0.0
  %209 = vmatpush2.msra.mxu0 0.0
  %210 = vmatprep.subr.mxu0 0.0
  %211 = vmatpush2.msra.mxu0 0.0
  %212 = vmatprep.subr.mxu0 0.0
  %213 = vmatpush2.msra.mxu0 0.0
  %214 = vmatprep.subr.mxu0 0.0
  %215 = vmatpush2.msra.mxu0 0.0
  %216 = vmatprep.subr.mxu0 0.0
  %217 = vmatpush2.msra.mxu0 0.0
  %218 = vmatprep.subr.mxu0 0.0
  %219 = vmatpush2.msra.mxu0 0.0
  %220 = vmatprep.subr.mxu0 0.0
  %221 = vmatpush2.msra.mxu0 0.0
  %222 = vmatprep.subr.mxu0 0.0
  %223 = vmatpush2.msra.mxu0 0.0
  %224 = vmatprep.subr.mxu0 0.0
  %225 = vmatpush2.msra.mxu0 0.0
  %226 = vmatprep.subr.mxu0 0.0
  %227 = vmatpush2.msra.mxu0 0.0
  %228 = vmatprep.subr.mxu0 0.0
  %229 = vmatpush2.msra.mxu0 0.0
  %230 = vmatprep.subr.mxu0 0.0
  %231 = vmatpush2.msra.mxu0 0.0
  %232 = vmatprep.subr.mxu0 0.0
  %233 = vmatpush2.msra.mxu0 0.0
  %234 = vmatprep.subr.mxu0 0.0
  %235 = vmatpush2.msra.mxu0 0.0
  %236 = vmatprep.mubr.f32.mxu0 0.0
  %237 = vmatmul.mubr.f32.gmra.mxu0 %v14
  %v238 = vpop.f32.mrf.mxu0
  %v239 = vadd.f32 %v92, %v238
  %v240 = vpop.f32.mrf.mxu0
  %v241 = vadd.f32 %v96, %v240
  %242 = vdwg.mxu0
  %243 = vst [vmem:[%s3] sm:$0xff] %v168
  %244 = vst [vmem:[%s3 + $0x8] sm:$0xff] %v170
  %245 = vst [vmem:[%s3 + $0x10] sm:$0xff] %v239
  %246 = vst [vmem:[%s3 + $0x18] sm:$0xff] %v241
  // Predicated region
  $region14: #{embeddings_forward.1} parent=0 // pred_check
    _
  $region15: #{embeddings_forward.1} parent=0 // pred_check_branch
    %248 = sbr.rel (0) target = $region17
  $region16: #{embeddings_forward.1} parent=0 // pred_region
    _
  $region17: #{embeddings_forward.1} parent=0 // pred_fallthru
    _
  // Predicated region
  $region18: #{embeddings_forward.1} parent=0 // pred_check
    _
  $region19: #{embeddings_forward.1} parent=0 // pred_check_branch
    %250 = sbr.rel (0) target = $region21
  $region20: #{embeddings_forward.1} parent=0 // pred_region
    _
  $region21: #{embeddings_forward.1} parent=0 // pred_fallthru
    _

</llo_original>
